<compile_context>
chip_gen: v6e
topology: v6e:2x2x1
jax: 0.10.0
libtpu: 0.0.40
codegen_flags: <defaults>
</compile_context>

<pallas_src>
import jax
import jax.numpy as jnp
from jax import lax
from jax.experimental import pallas as pl
from jax.experimental.pallas import tpu as pltpu


def _build_kernel(K, dilation, T, N, compute_dtype, emit_preact):
    """Kernel for fixed, static conv geometry (all Python ints / dtypes)."""
    shifts = tuple((K - 1 - k) * dilation for k in range(K))

    def kernel(x_ref, w1_ref, b1_ref, wd_ref, bd_ref, w2_ref, b2_ref,
               final_ref, *out_refs):
        x = x_ref[0]                                     # (c_in, N), time on lanes

        # Within-batch time index of every lane (B_TILE batches are stacked
        # along the lane axis).  Hoisted out of the tap loops.
        pos = lax.broadcasted_iota(jnp.int32, (1, N), 1) % T

        def tap(v, shift):
            # v shifted right by `shift` within each batch's own T-lane slab,
            # zero-filled at the causal left edge.  roll -> XLU slot,
            # select -> VPU; no masked partial stores, no scratch.
            if shift == 0:
                return v
            rolled = pltpu.roll(v, shift=shift, axis=1)
            return jnp.where(pos >= shift, rolled, jnp.zeros_like(rolled))

        # ---- conv1: K accumulated MXU dots (no im2col scratch) --------------
        pre1 = b1_ref[...]                               # (c_out, 1) f32
        for k in range(K):
            s = shifts[k]
            if s >= T:                                   # tap entirely in the pad
                continue
            pre1 = pre1 + jnp.dot(w1_ref[k], tap(x, s),
                                  preferred_element_type=jnp.float32)
        h32 = jnp.maximum(pre1, 0.0)                     # activation1 (ReLU, f32)
        # dropout1: identity (p=0.0 / eval mode)

        # ---- residual path: 1x1 downsample conv on the unshifted input ------
        res = jnp.dot(wd_ref[...], x,
                      preferred_element_type=jnp.float32) + bd_ref[...]

        # ---- conv2: same tap accumulation on h -------------------------------
        h = h32.astype(compute_dtype)
        pre2 = b2_ref[...]
        for k in range(K):
            s = shifts[k]
            if s >= T:
                continue
            pre2 = pre2 + jnp.dot(w2_ref[k], tap(h, s),
                                  preferred_element_type=jnp.float32)
        out = jnp.maximum(pre2, 0.0)                     # activation2 (ReLU, f32)
        # dropout2: identity (p=0.0 / eval mode)

        final_ref[0] = jnp.maximum(out + res, 0.0).astype(final_ref.dtype)
        if emit_preact:
            out_refs[0][0] = out.astype(out_refs[0].dtype)

    return kernel


def _auto_b_tile(B, T, *, target_lanes=512, min_grid=4):
    """Batches stacked per grid step: aim for >=512 lanes per step but keep
    the grid long enough that both v7x TensorCores get several steps."""
    bt = min(B, max(1, -(-target_lanes // T)))
    while bt > 1 and -(-B // bt) < min_grid:
        bt //= 2
    return max(bt, 1)


def temporal_block_forward(x_nct, torch_params, *, kernel_size, dilation,
                           b_tile=None, compute_dtype=jnp.float32,
                           return_preactivation=True):
    """x_nct: (B, Cin, T) float32 (PyTorch NCT layout).

    Returns (final, out), each (B, Cout, T); `out` is None when
    return_preactivation=False.
    """
    w1, b1, w2, b2, wd, bd = torch_params          # PyTorch Conv1d layouts
    B, c_in, T = x_nct.shape
    c_out = w1.shape[0]
    K = kernel_size

    if b_tile is None:
        b_tile = _auto_b_tile(B, T)
    n_steps = -(-B // b_tile)
    Bp = n_steps * b_tile
    N = b_tile * T                                  # lanes per grid step

    # ---- host-side layout plumbing (done once, outside the kernel) ----------
    x32 = x_nct.astype(jnp.float32)
    if Bp != B:
        x32 = jnp.concatenate(
            [x32, jnp.zeros((Bp - B, c_in, T), jnp.float32)], axis=0)
    # Stack b_tile batches along the lane/time axis -> lane-dense blocks.
    x_stk = (x32.reshape(n_steps, b_tile, c_in, T)
                 .transpose(0, 2, 1, 3)
                 .reshape(n_steps, c_in, N)
                 .astype(compute_dtype))

    # Weights tap-major: w[k] is the (Cout, Cin) weight of tap k.
    w1_t = jnp.transpose(w1, (2, 0, 1)).astype(compute_dtype)   # (K, Cout, Cin)
    w2_t = jnp.transpose(w2, (2, 0, 1)).astype(compute_dtype)   # (K, Cout, Cout)
    wd_m = wd[:, :, 0].astype(compute_dtype)                    # (Cout, Cin)
    b1_c = b1.reshape(c_out, 1).astype(jnp.float32)
    b2_c = b2.reshape(c_out, 1).astype(jnp.float32)
    bd_c = bd.reshape(c_out, 1).astype(jnp.float32)

    kernel = _build_kernel(K, dilation, T, N, compute_dtype,
                           emit_preact=return_preactivation)

    out_shapes = [jax.ShapeDtypeStruct((n_steps, c_out, N), jnp.float32)]
    out_specs = [pl.BlockSpec((1, c_out, N), lambda i: (i, 0, 0))]
    if return_preactivation:
        out_shapes.append(jax.ShapeDtypeStruct((n_steps, c_out, N), jnp.float32))
        out_specs.append(pl.BlockSpec((1, c_out, N), lambda i: (i, 0, 0)))

    itemsize = jnp.dtype(compute_dtype).itemsize
    flops = 2 * Bp * T * (K * c_in * c_out + K * c_out * c_out + c_in * c_out)
    bytes_accessed = (x_stk.size * itemsize
                      + len(out_shapes) * n_steps * c_out * N * 4
                      + (w1_t.size + w2_t.size + wd_m.size) * itemsize
                      + (b1_c.size + b2_c.size + bd_c.size) * 4)

    grid_spec = pltpu.PrefetchScalarGridSpec(
        num_scalar_prefetch=0,
        grid=(n_steps,),
        in_specs=[
            pl.BlockSpec((1, c_in, N), lambda i: (i, 0, 0)),       # x (b_tile batches)
            pl.BlockSpec((K, c_out, c_in), lambda i: (0, 0, 0)),   # conv1 taps
            pl.BlockSpec((c_out, 1), lambda i: (0, 0)),            # b1
            pl.BlockSpec((c_out, c_in), lambda i: (0, 0)),         # downsample W
            pl.BlockSpec((c_out, 1), lambda i: (0, 0)),            # downsample b
            pl.BlockSpec((K, c_out, c_out), lambda i: (0, 0, 0)),  # conv2 taps
            pl.BlockSpec((c_out, 1), lambda i: (0, 0)),            # b2
        ],
        out_specs=tuple(out_specs),
    )

    results = pl.pallas_call(
        kernel,
        out_shape=tuple(out_shapes),
        grid_spec=grid_spec,
        compiler_params=pltpu.CompilerParams(
            dimension_semantics=("parallel",),      # shard grid steps across TCs (v7x)
            vmem_limit_bytes=32 * 1024 * 1024),
        cost_estimate=pl.CostEstimate(flops=flops, transcendentals=0,
                                      bytes_accessed=bytes_accessed),
    )(x_stk, w1_t, b1_c, wd_m, bd_c, w2_t, b2_c)

    def unstack(y_stk):
        y = (y_stk.reshape(n_steps, c_out, b_tile, T)
                  .transpose(0, 2, 1, 3)
                  .reshape(Bp, c_out, T))
        return y[:B]

    final = unstack(results[0])
    out = unstack(results[1]) if return_preactivation else None
    return final, out


# ---------------- pure-JAX reference (for correctness check only) ----------------
def _ref_causal_conv1d(x_nct, w_oik, b_o, dilation):
    pad = (w_oik.shape[-1] - 1) * dilation
    y = lax.conv_general_dilated(
        x_nct, w_oik, window_strides=(1,), padding=[(pad, 0)],
        rhs_dilation=(dilation,), dimension_numbers=('NCH', 'OIH', 'NCH'),
        precision=lax.Precision.HIGHEST)
    return y + b_o[None, :, None]


def temporal_block_ref(x_nct, torch_params, dilation):
    w1, b1, w2, b2, wd, bd = torch_params
    h = jax.nn.relu(_ref_causal_conv1d(x_nct, w1, b1, dilation))
    out = jax.nn.relu(_ref_causal_conv1d(h, w2, b2, dilation))
    res = lax.conv_general_dilated(
        x_nct, wd, window_strides=(1,), padding=[(0, 0)],
        dimension_numbers=('NCH', 'OIH', 'NCH'),
        precision=lax.Precision.HIGHEST) + bd[None, :, None]
    return jax.nn.relu(out + res), out


if __name__ == "__main__":
    B, C_IN, C_OUT, T, K, DIL = 16, 4, 8, 32, 3, 4   # causal pad = (K-1)*DIL = 8

    key = jax.random.PRNGKey(0)
    ks = jax.random.split(key, 7)
    x = jax.random.normal(ks[0], (B, C_IN, T), jnp.float32)

    # Deterministic synthetic parameters in PyTorch Conv1d layout (Cout, Cin, K).
    w1 = 0.3 * jax.random.normal(ks[1], (C_OUT, C_IN, K), jnp.float32)
    b1 = 0.1 * jax.random.normal(ks[2], (C_OUT,), jnp.float32)
    w2 = 0.3 * jax.random.normal(ks[3], (C_OUT, C_OUT, K), jnp.float32)
    b2 = 0.1 * jax.random.normal(ks[4], (C_OUT,), jnp.float32)
    wd = 0.3 * jax.random.normal(ks[5], (C_OUT, C_IN, 1), jnp.float32)
    bd = 0.1 * jax.random.normal(ks[6], (C_OUT,), jnp.float32)
    params = (w1, b1, w2, b2, wd, bd)

    ref_final, ref_out = temporal_block_ref(x, params, DIL)

    # ---- f32 path (default; v5e-friendly), strict tolerance -----------------
    final, out = temporal_block_forward(x, params, kernel_size=K, dilation=DIL)
    final, out = jax.block_until_ready((final, out))
    assert final.shape == (B, C_OUT, T) and out.shape == (B, C_OUT, T)
    assert jnp.allclose(final, ref_final, atol=1e-3, rtol=1e-3), \
        float(jnp.max(jnp.abs(final - ref_final)))
    assert jnp.allclose(out, ref_out, atol=1e-3, rtol=1e-3), \
        float(jnp.max(jnp.abs(out - ref_out)))

    # ---- bf16 activations/weights (v6e/v7x HBM-bound optimization) ----------
    final_bf, out_bf = temporal_block_forward(
        x, params, kernel_size=K, dilation=DIL, compute_dtype=jnp.bfloat16)
    final_bf, out_bf = jax.block_until_ready((final_bf, out_bf))
    assert jnp.allclose(final_bf, ref_final, atol=1e-1, rtol=1e-1), \
        float(jnp.max(jnp.abs(final_bf - ref_final)))
    assert jnp.allclose(out_bf, ref_out, atol=1e-1, rtol=1e-1), \
        float(jnp.max(jnp.abs(out_bf - ref_out)))

    # ---- final-only variant (drops pre-residual output writeback) -----------
    final_only, none_out = temporal_block_forward(
        x, params, kernel_size=K, dilation=DIL, return_preactivation=False)
    final_only = jax.block_until_ready(final_only)
    assert none_out is None
    assert jnp.allclose(final_only, ref_final, atol=1e-3, rtol=1e-3), \
        float(jnp.max(jnp.abs(final_only - ref_final)))

    print("KERNEL_OK")
</pallas_src>

<mosaic_0001>
module attributes {stable_mosaic.version = 11 : i64} {
  func.func @kernel(%arg0: i32, %arg1: memref<1x4x128xf32, #tpu.memory_space<vmem>>, %arg2: memref<3x8x4xf32, #tpu.memory_space<vmem>>, %arg3: memref<8x1xf32, #tpu.memory_space<vmem>>, %arg4: memref<8x4xf32, #tpu.memory_space<vmem>>, %arg5: memref<8x1xf32, #tpu.memory_space<vmem>>, %arg6: memref<3x8x8xf32, #tpu.memory_space<vmem>>, %arg7: memref<8x1xf32, #tpu.memory_space<vmem>>, %arg8: memref<1x8x128xf32, #tpu.memory_space<vmem>>, %arg9: memref<1x8x128xf32, #tpu.memory_space<vmem>>) attributes {dimension_semantics = [#tpu.dimension_semantics<parallel>], iteration_bounds = array<i64: 4>, scalar_prefetch = 0 : i64, scratch_operands = 0 : i64, tpu.core_type = #tpu.core_type<tc>, window_params = [{transform_indices = @transform_0, window_bounds = array<i64: 1, 4, 128>}, {pipeline_mode = #tpu.pipeline_mode<synchronous>, transform_indices = @transform_1, window_bounds = array<i64: 3, 8, 4>}, {pipeline_mode = #tpu.pipeline_mode<synchronous>, transform_indices = @transform_2, window_bounds = array<i64: 8, 1>}, {pipeline_mode = #tpu.pipeline_mode<synchronous>, transform_indices = @transform_3, window_bounds = array<i64: 8, 4>}, {pipeline_mode = #tpu.pipeline_mode<synchronous>, transform_indices = @transform_4, window_bounds = array<i64: 8, 1>}, {pipeline_mode = #tpu.pipeline_mode<synchronous>, transform_indices = @transform_5, window_bounds = array<i64: 3, 8, 8>}, {pipeline_mode = #tpu.pipeline_mode<synchronous>, transform_indices = @transform_6, window_bounds = array<i64: 8, 1>}, {transform_indices = @transform_7, window_bounds = array<i64: 1, 8, 128>}, {transform_indices = @transform_8, window_bounds = array<i64: 1, 8, 128>}]} {
    %c0 = arith.constant 0 : index
    %c0_0 = arith.constant 0 : index
    %c0_1 = arith.constant 0 : index
    %0 = vector.load %arg1[%c0, %c0_0, %c0_1] : memref<1x4x128xf32, #tpu.memory_space<vmem>>, vector<1x4x128xf32>
    %1 = vector.shape_cast %0 : vector<1x4x128xf32> to vector<4x128xf32>
    %2 = tpu.iota {dimensions = array<i32: 1>} : vector<1x128xi32>
    %c32_i32 = arith.constant 32 : i32
    %c0_i32 = arith.constant 0 : i32
    %3 = arith.cmpi eq, %c32_i32, %c0_i32 : i32
    %c1_i32 = arith.constant 1 : i32
    %4 = arith.select %3, %c1_i32, %c32_i32 : i32
    %5 = vector.broadcast %4 : i32 to vector<1x128xi32>
    %6 = arith.remsi %2, %5 : vector<1x128xi32>
    %c0_i32_2 = arith.constant 0 : i32
    %7 = vector.broadcast %c0_i32_2 : i32 to vector<1x128xi32>
    %8 = arith.cmpi ne, %6, %7 : vector<1x128xi32>
    %c0_i32_3 = arith.constant 0 : i32
    %9 = vector.broadcast %c0_i32_3 : i32 to vector<1x128xi32>
    %10 = arith.cmpi slt, %6, %9 : vector<1x128xi32>
    %c0_i32_4 = arith.constant 0 : i32
    %11 = arith.cmpi slt, %4, %c0_i32_4 : i32
    %12 = vector.broadcast %11 : i1 to vector<1x128xi1>
    %13 = vector.broadcast %12 : vector<1x128xi1> to vector<1x128xi1>
    %14 = arith.xori %10, %13 : vector<1x128xi1>
    %15 = arith.andi %14, %8 : vector<1x128xi1>
    %16 = vector.broadcast %4 : i32 to vector<1x128xi32>
    %17 = arith.addi %6, %16 : vector<1x128xi32>
    %18 = arith.select %15, %17, %6 : vector<1x128xi1>, vector<1x128xi32>
    %c0_5 = arith.constant 0 : index
    %c0_6 = arith.constant 0 : index
    %19 = vector.load %arg3[%c0_5, %c0_6] : memref<8x1xf32, #tpu.memory_space<vmem>>, vector<8x1xf32>
    %c0_7 = arith.constant 0 : index
    %c0_8 = arith.constant 0 : index
    %c0_9 = arith.constant 0 : index
    %20 = vector.load %arg2[%c0_7, %c0_8, %c0_9] : memref<3x8x4xf32, #tpu.memory_space<vmem>>, vector<1x8x4xf32>
    %21 = vector.shape_cast %20 : vector<1x8x4xf32> to vector<8x4xf32>
    %c8_i32 = arith.constant 8 : i32
    %22 = tpu.dynamic_rotate %1 by %c8_i32 dim 1 : vector<4x128xf32>, i32 -> vector<4x128xf32>
    %c8_i32_10 = arith.constant 8 : i32
    %23 = vector.broadcast %c8_i32_10 : i32 to vector<1x128xi32>
    %24 = arith.cmpi sge, %18, %23 : vector<1x128xi32>
    %cst = arith.constant 0.000000e+00 : f32
    %25 = vector.broadcast %cst : f32 to vector<4x128xf32>
    %26 = vector.shape_cast %24 : vector<1x128xi1> to vector<1x128xi1>
    %27 = vector.broadcast %26 : vector<1x128xi1> to vector<4x128xi1>
    %28 = arith.select %27, %22, %25 : vector<4x128xi1>, vector<4x128xf32>
    %cst_11 = arith.constant dense<0.000000e+00> : vector<8x128xf32>
    %29 = tpu.matmul %21, %28, %cst_11 {dimension_numbers = #tpu.dot_dimension_numbers<[1], [0], [0], [1], [0, 0, 1, 1], [], []>} : vector<8x4xf32>, vector<4x128xf32>, vector<8x128xf32> -> vector<8x128xf32>
    %30 = vector.broadcast %19 : vector<8x1xf32> to vector<8x128xf32>
    %31 = arith.addf %30, %29 : vector<8x128xf32>
    %c1 = arith.constant 1 : index
    %c0_12 = arith.constant 0 : index
    %c0_13 = arith.constant 0 : index
    %32 = vector.load %arg2[%c1, %c0_12, %c0_13] : memref<3x8x4xf32, #tpu.memory_space<vmem>>, vector<1x8x4xf32>
    %33 = vector.shape_cast %32 : vector<1x8x4xf32> to vector<8x4xf32>
    %c4_i32 = arith.constant 4 : i32
    %34 = tpu.dynamic_rotate %1 by %c4_i32 dim 1 : vector<4x128xf32>, i32 -> vector<4x128xf32>
    %c4_i32_14 = arith.constant 4 : i32
    %35 = vector.broadcast %c4_i32_14 : i32 to vector<1x128xi32>
    %36 = arith.cmpi sge, %18, %35 : vector<1x128xi32>
    %cst_15 = arith.constant 0.000000e+00 : f32
    %37 = vector.broadcast %cst_15 : f32 to vector<4x128xf32>
    %38 = vector.shape_cast %36 : vector<1x128xi1> to vector<1x128xi1>
    %39 = vector.broadcast %38 : vector<1x128xi1> to vector<4x128xi1>
    %40 = arith.select %39, %34, %37 : vector<4x128xi1>, vector<4x128xf32>
    %cst_16 = arith.constant dense<0.000000e+00> : vector<8x128xf32>
    %41 = tpu.matmul %33, %40, %cst_16 {dimension_numbers = #tpu.dot_dimension_numbers<[1], [0], [0], [1], [0, 0, 1, 1], [], []>} : vector<8x4xf32>, vector<4x128xf32>, vector<8x128xf32> -> vector<8x128xf32>
    %42 = arith.addf %31, %41 : vector<8x128xf32>
    %c2 = arith.constant 2 : index
    %c0_17 = arith.constant 0 : index
    %c0_18 = arith.constant 0 : index
    %43 = vector.load %arg2[%c2, %c0_17, %c0_18] : memref<3x8x4xf32, #tpu.memory_space<vmem>>, vector<1x8x4xf32>
    %44 = vector.shape_cast %43 : vector<1x8x4xf32> to vector<8x4xf32>
    %cst_19 = arith.constant dense<0.000000e+00> : vector<8x128xf32>
    %45 = tpu.matmul %44, %1, %cst_19 {dimension_numbers = #tpu.dot_dimension_numbers<[1], [0], [0], [1], [0, 0, 1, 1], [], []>} : vector<8x4xf32>, vector<4x128xf32>, vector<8x128xf32> -> vector<8x128xf32>
    %46 = arith.addf %42, %45 : vector<8x128xf32>
    %cst_20 = arith.constant 0.000000e+00 : f32
    %47 = vector.broadcast %cst_20 : f32 to vector<8x128xf32>
    %48 = arith.maximumf %46, %47 : vector<8x128xf32>
    %c0_21 = arith.constant 0 : index
    %c0_22 = arith.constant 0 : index
    %49 = vector.load %arg4[%c0_21, %c0_22] : memref<8x4xf32, #tpu.memory_space<vmem>>, vector<8x4xf32>
    %cst_23 = arith.constant dense<0.000000e+00> : vector<8x128xf32>
    %50 = tpu.matmul %49, %1, %cst_23 {dimension_numbers = #tpu.dot_dimension_numbers<[1], [0], [0], [1], [0, 0, 1, 1], [], []>} : vector<8x4xf32>, vector<4x128xf32>, vector<8x128xf32> -> vector<8x128xf32>
    %c0_24 = arith.constant 0 : index
    %c0_25 = arith.constant 0 : index
    %51 = vector.load %arg5[%c0_24, %c0_25] : memref<8x1xf32, #tpu.memory_space<vmem>>, vector<8x1xf32>
    %52 = vector.broadcast %51 : vector<8x1xf32> to vector<8x128xf32>
    %53 = arith.addf %50, %52 : vector<8x128xf32>
    %c0_26 = arith.constant 0 : index
    %c0_27 = arith.constant 0 : index
    %54 = vector.load %arg7[%c0_26, %c0_27] : memref<8x1xf32, #tpu.memory_space<vmem>>, vector<8x1xf32>
    %c0_28 = arith.constant 0 : index
    %c0_29 = arith.constant 0 : index
    %c0_30 = arith.constant 0 : index
    %55 = vector.load %arg6[%c0_28, %c0_29, %c0_30] : memref<3x8x8xf32, #tpu.memory_space<vmem>>, vector<1x8x8xf32>
    %56 = vector.shape_cast %55 : vector<1x8x8xf32> to vector<8x8xf32>
    %c8_i32_31 = arith.constant 8 : i32
    %57 = tpu.dynamic_rotate %48 by %c8_i32_31 dim 1 : vector<8x128xf32>, i32 -> vector<8x128xf32>
    %c8_i32_32 = arith.constant 8 : i32
    %58 = vector.broadcast %c8_i32_32 : i32 to vector<1x128xi32>
    %59 = arith.cmpi sge, %18, %58 : vector<1x128xi32>
    %cst_33 = arith.constant 0.000000e+00 : f32
    %60 = vector.broadcast %cst_33 : f32 to vector<8x128xf32>
    %61 = vector.shape_cast %59 : vector<1x128xi1> to vector<1x128xi1>
    %62 = vector.broadcast %61 : vector<1x128xi1> to vector<8x128xi1>
    %63 = arith.select %62, %57, %60 : vector<8x128xi1>, vector<8x128xf32>
    %cst_34 = arith.constant dense<0.000000e+00> : vector<8x128xf32>
    %64 = tpu.matmul %56, %63, %cst_34 {dimension_numbers = #tpu.dot_dimension_numbers<[1], [0], [0], [1], [0, 0, 1, 1], [], []>} : vector<8x8xf32>, vector<8x128xf32>, vector<8x128xf32> -> vector<8x128xf32>
    %65 = vector.broadcast %54 : vector<8x1xf32> to vector<8x128xf32>
    %66 = arith.addf %65, %64 : vector<8x128xf32>
    %c1_35 = arith.constant 1 : index
    %c0_36 = arith.constant 0 : index
    %c0_37 = arith.constant 0 : index
    %67 = vector.load %arg6[%c1_35, %c0_36, %c0_37] : memref<3x8x8xf32, #tpu.memory_space<vmem>>, vector<1x8x8xf32>
    %68 = vector.shape_cast %67 : vector<1x8x8xf32> to vector<8x8xf32>
    %c4_i32_38 = arith.constant 4 : i32
    %69 = tpu.dynamic_rotate %48 by %c4_i32_38 dim 1 : vector<8x128xf32>, i32 -> vector<8x128xf32>
    %c4_i32_39 = arith.constant 4 : i32
    %70 = vector.broadcast %c4_i32_39 : i32 to vector<1x128xi32>
    %71 = arith.cmpi sge, %18, %70 : vector<1x128xi32>
    %cst_40 = arith.constant 0.000000e+00 : f32
    %72 = vector.broadcast %cst_40 : f32 to vector<8x128xf32>
    %73 = vector.shape_cast %71 : vector<1x128xi1> to vector<1x128xi1>
    %74 = vector.broadcast %73 : vector<1x128xi1> to vector<8x128xi1>
    %75 = arith.select %74, %69, %72 : vector<8x128xi1>, vector<8x128xf32>
    %cst_41 = arith.constant dense<0.000000e+00> : vector<8x128xf32>
    %76 = tpu.matmul %68, %75, %cst_41 {dimension_numbers = #tpu.dot_dimension_numbers<[1], [0], [0], [1], [0, 0, 1, 1], [], []>} : vector<8x8xf32>, vector<8x128xf32>, vector<8x128xf32> -> vector<8x128xf32>
    %77 = arith.addf %66, %76 : vector<8x128xf32>
    %c2_42 = arith.constant 2 : index
    %c0_43 = arith.constant 0 : index
    %c0_44 = arith.constant 0 : index
    %78 = vector.load %arg6[%c2_42, %c0_43, %c0_44] : memref<3x8x8xf32, #tpu.memory_space<vmem>>, vector<1x8x8xf32>
    %79 = vector.shape_cast %78 : vector<1x8x8xf32> to vector<8x8xf32>
    %cst_45 = arith.constant dense<0.000000e+00> : vector<8x128xf32>
    %80 = tpu.matmul %79, %48, %cst_45 {dimension_numbers = #tpu.dot_dimension_numbers<[1], [0], [0], [1], [0, 0, 1, 1], [], []>} : vector<8x8xf32>, vector<8x128xf32>, vector<8x128xf32> -> vector<8x128xf32>
    %81 = arith.addf %77, %80 : vector<8x128xf32>
    %cst_46 = arith.constant 0.000000e+00 : f32
    %82 = vector.broadcast %cst_46 : f32 to vector<8x128xf32>
    %83 = arith.maximumf %81, %82 : vector<8x128xf32>
    %84 = arith.addf %83, %53 : vector<8x128xf32>
    %cst_47 = arith.constant 0.000000e+00 : f32
    %85 = vector.broadcast %cst_47 : f32 to vector<8x128xf32>
    %86 = arith.maximumf %84, %85 : vector<8x128xf32>
    %c0_48 = arith.constant 0 : index
    %c0_49 = arith.constant 0 : index
    %c0_50 = arith.constant 0 : index
    %87 = vector.load %arg8[%c0_48, %c0_49, %c0_50] : memref<1x8x128xf32, #tpu.memory_space<vmem>>, vector<1x8x128xf32>
    %88 = vector.shape_cast %87 : vector<1x8x128xf32> to vector<8x128xf32>
    %89 = vector.shape_cast %86 : vector<8x128xf32> to vector<1x8x128xf32>
    tpu.vector_store %arg8[%c0_48, %c0_49, %c0_50], %89 {strides = array<i32>} : memref<1x8x128xf32, #tpu.memory_space<vmem>>, vector<1x8x128xf32>,
    %c0_51 = arith.constant 0 : index
    %c0_52 = arith.constant 0 : index
    %c0_53 = arith.constant 0 : index
    %90 = vector.load %arg9[%c0_51, %c0_52, %c0_53] : memref<1x8x128xf32, #tpu.memory_space<vmem>>, vector<1x8x128xf32>
    %91 = vector.shape_cast %90 : vector<1x8x128xf32> to vector<8x128xf32>
    %92 = vector.shape_cast %83 : vector<8x128xf32> to vector<1x8x128xf32>
    tpu.vector_store %arg9[%c0_51, %c0_52, %c0_53], %92 {strides = array<i32>} : memref<1x8x128xf32, #tpu.memory_space<vmem>>, vector<1x8x128xf32>,
    return
  }
  func.func @transform_0(%arg0: i32) -> (i32, i32, i32) {
    %c0_i32 = arith.constant 0 : i32
    %c0_i32_0 = arith.constant 0 : i32
    %c0_i32_1 = arith.constant 0 : i32
    return %arg0, %c0_i32, %c0_i32_0 : i32, i32, i32
  }
  func.func @transform_1(%arg0: i32) -> (i32, i32, i32) {
    %c0_i32 = arith.constant 0 : i32
    %c0_i32_0 = arith.constant 0 : i32
    %c0_i32_1 = arith.constant 0 : i32
    %c0_i32_2 = arith.constant 0 : i32
    return %c0_i32, %c0_i32_0, %c0_i32_1 : i32, i32, i32
  }
  func.func @transform_2(%arg0: i32) -> (i32, i32) {
    %c0_i32 = arith.constant 0 : i32
    %c0_i32_0 = arith.constant 0 : i32
    %c0_i32_1 = arith.constant 0 : i32
    return %c0_i32, %c0_i32_0 : i32, i32
  }
  func.func @transform_3(%arg0: i32) -> (i32, i32) {
    %c0_i32 = arith.constant 0 : i32
    %c0_i32_0 = arith.constant 0 : i32
    %c0_i32_1 = arith.constant 0 : i32
    return %c0_i32, %c0_i32_0 : i32, i32
  }
  func.func @transform_4(%arg0: i32) -> (i32, i32) {
    %c0_i32 = arith.constant 0 : i32
    %c0_i32_0 = arith.constant 0 : i32
    %c0_i32_1 = arith.constant 0 : i32
    return %c0_i32, %c0_i32_0 : i32, i32
  }
  func.func @transform_5(%arg0: i32) -> (i32, i32, i32) {
    %c0_i32 = arith.constant 0 : i32
    %c0_i32_0 = arith.constant 0 : i32
    %c0_i32_1 = arith.constant 0 : i32
    %c0_i32_2 = arith.constant 0 : i32
    return %c0_i32, %c0_i32_0, %c0_i32_1 : i32, i32, i32
  }
  func.func @transform_6(%arg0: i32) -> (i32, i32) {
    %c0_i32 = arith.constant 0 : i32
    %c0_i32_0 = arith.constant 0 : i32
    %c0_i32_1 = arith.constant 0 : i32
    return %c0_i32, %c0_i32_0 : i32, i32
  }
  func.func @transform_7(%arg0: i32) -> (i32, i32, i32) {
    %c0_i32 = arith.constant 0 : i32
    %c0_i32_0 = arith.constant 0 : i32
    %c0_i32_1 = arith.constant 0 : i32
    return %arg0, %c0_i32, %c0_i32_0 : i32, i32, i32
  }
  func.func @transform_8(%arg0: i32) -> (i32, i32, i32) {
    %c0_i32 = arith.constant 0 : i32
    %c0_i32_0 = arith.constant 0 : i32
    %c0_i32_1 = arith.constant 0 : i32
    return %arg0, %c0_i32, %c0_i32_0 : i32, i32, i32
  }
}

</mosaic_0001>

<llo_original>
// kernel: tpu_custom_call.1
$region0: #{tpu_custom_call.1}
  #allocation0 [shape = 'u32[]', space=smem, size = 0x4, offset = 0x4, fixed_abs, tag = 'smem constant byte address 0x4 - core index']
  #allocation1 [shape = 'u32[144,128]{1,0:T(1,128)}', space=vmem, size = 0x12000, scoped, tag = 'internal scratch']
  %s0 = inlined_call_operand.vmem [shape: f32[4,4,128], index: 0, kind: input, shape index: {}]
  %s1 = inlined_call_operand.vmem [shape: f32[3,8,4], index: 1, kind: input, shape index: {}]
  %s2 = inlined_call_operand.vmem [shape: f32[8,1], index: 2, kind: input, shape index: {}]
  %s3 = inlined_call_operand.vmem [shape: f32[8,4], index: 3, kind: input, shape index: {}]
  %s4 = inlined_call_operand.vmem [shape: f32[8,1], index: 4, kind: input, shape index: {}]
  %s5 = inlined_call_operand.vmem [shape: f32[3,8,8], index: 5, kind: input, shape index: {}]
  %s6 = inlined_call_operand.vmem [shape: f32[8,1], index: 6, kind: input, shape index: {}]
  %s7 = inlined_call_operand.hbm [shape: f32[4,8,128], index: 7, kind: output, shape index: {0}]
  %s8 = inlined_call_operand.hbm [shape: f32[4,8,128], index: 8, kind: output, shape index: {1}]
  %9 = xla_tuple %s7, %s8
  %s10 = sld [smem:[#allocation0]]
  $region69: #{tpu_custom_call.1} parent=0
    _
  %s12 = ssub.s32 1, %s10
  %s13 = scalar_select 0, %s12, %s10
  $region1: #{tpu_custom_call.1} parent=0
    #allocation2 [shape = 'u8[8192]{0}', space=vmem, size = 0x2000, scoped, tag = 'output window, operand 0']
    #allocation3 [shape = 's32[2]{0}', space=sflag, size = 0x8, scoped, tag = 'scoped memory for tpu_custom_call.1']
    #allocation4 [shape = 'u8[8192]{0}', space=vmem, size = 0x2000, scoped, tag = 'output window, operand 1']
    #allocation5 [shape = 's32[2]{0}', space=sflag, size = 0x8, scoped, tag = 'scoped memory for tpu_custom_call.1']
    %14 = vsyncpa [#allocation3], 0
    %s15 = scalar_lea.sflag [#allocation3], 1
    %16 = vsyncpa %s15, 0
    %17 = vsyncpa [#allocation5], 0
    %s18 = scalar_lea.sflag [#allocation5], 1
    %19 = vsyncpa %s18, 0
    loop: start=0, step=1, limit=6
    $region2: #{tpu_custom_call.1} parent=1 // loop_pre_header
      _
    $region3: #{tpu_custom_call.1} parent=1 // loop_header
      %s21 = sphi 0, %s25
      %p22 = scmp.ge.s32.totalorder %s21, 6
      %s31 = sphi 0, %s33
      %s34 = sphi 0, %s31
      %s35 = sphi 0, %s34
      %s51 = sphi 0, %s35
      %s55 = sphi 0, %s55
      %s57 = sphi 0, %s55
      %s58 = sphi 0, %s57
      %s72 = sphi 0, %s58
      %s76 = sphi 0, %s76
      %s78 = sphi 0, %s76
      %s79 = sphi 0, %s78
      %s93 = sphi 0, %s79
      %s97 = sphi 0, %s97
      %s99 = sphi 0, %s97
      %s100 = sphi 0, %s99
      %s114 = sphi 0, %s100
      %s118 = sphi 0, %s118
      %s120 = sphi 0, %s118
      %s121 = sphi 0, %s120
      %s135 = sphi 0, %s121
      %s139 = sphi 0, %s139
      %s141 = sphi 0, %s139
      %s142 = sphi 0, %s141
      %s156 = sphi 0, %s142
      %s160 = sphi 0, %s160
      %s162 = sphi 0, %s160
      %s163 = sphi 0, %s162
      %s177 = sphi 0, %s163
      %s183 = sphi 0, %s185
      %s186 = sphi 0, %s183
      %s187 = sphi 0, %s186
      %s203 = sphi 0, %s187
      %s209 = sphi 0, %s211
      %s212 = sphi 0, %s209
      %s213 = sphi 0, %s212
      %s229 = sphi 0, %s213
    $region4: #{tpu_custom_call.1} parent=1 // loop_header_branch
      %24 = sbr.rel (%p22) target = $region8
    $region5: #{tpu_custom_call.1} parent=1 // loop_body
      %s26 = ssub.s32 %s21, 1
      %s27 = ssub.s32 %s21, 2
      %s28 = sadd.s32 %s21, 1
      %s29 = ssub.s32 %s21, %s28
      %p30 = scmp.eq.s32.totalorder %s29, 0
      %s32 = sadd.s32 %s31, 1
      %s33 = scalar_select %p30, %s31, %s32
      %p36 = pneg %p30
      %p37 = scmp.eq.s32.totalorder %s21, 3
      %p38 = por %p36, %p37
      %p39 = scmp.ne.s32.totalorder %s31, %s34
      %p40 = scmp.eq.s32.totalorder %s21, 0
      %p41 = por %p39, %p40
      %p42 = scmp.ne.s32.totalorder %s31, %s34
      %p43 = scmp.eq.s32.totalorder %s26, 3
      %p44 = por %p42, %p43
      %p45 = scmp.ne.s32.totalorder %s34, %s35
      %p46 = scmp.eq.s32.totalorder %s26, 0
      %p47 = por %p45, %p46
      %p48 = scmp.ne.s32.totalorder %s34, %s35
      %p49 = scmp.eq.s32.totalorder %s27, 3
      %p50 = por %p48, %p49
      %p52 = scmp.ne.s32.totalorder %s35, %s51
      %p53 = scmp.eq.s32.totalorder %s27, 0
      %p54 = por %p52, %p53
      %s56 = sadd.s32 %s55, 1
      %p59 = scmp.eq.s32.totalorder %s21, 3
      %p60 = scmp.ne.s32.totalorder %s55, %s57
      %p61 = scmp.eq.s32.totalorder %s21, 0
      %p62 = por %p60, %p61
      %p63 = scmp.ne.s32.totalorder %s55, %s57
      %p64 = scmp.eq.s32.totalorder %s26, 3
      %p65 = por %p63, %p64
      %p66 = scmp.ne.s32.totalorder %s57, %s58
      %p67 = scmp.eq.s32.totalorder %s26, 0
      %p68 = por %p66, %p67
      %p69 = scmp.ne.s32.totalorder %s57, %s58
      %p70 = scmp.eq.s32.totalorder %s27, 3
      %p71 = por %p69, %p70
      %p73 = scmp.ne.s32.totalorder %s58, %s72
      %p74 = scmp.eq.s32.totalorder %s27, 0
      %p75 = por %p73, %p74
      %s77 = sadd.s32 %s76, 1
      %p80 = scmp.eq.s32.totalorder %s21, 3
      %p81 = scmp.ne.s32.totalorder %s76, %s78
      %p82 = scmp.eq.s32.totalorder %s21, 0
      %p83 = por %p81, %p82
      %p84 = scmp.ne.s32.totalorder %s76, %s78
      %p85 = scmp.eq.s32.totalorder %s26, 3
      %p86 = por %p84, %p85
      %p87 = scmp.ne.s32.totalorder %s78, %s79
      %p88 = scmp.eq.s32.totalorder %s26, 0
      %p89 = por %p87, %p88
      %p90 = scmp.ne.s32.totalorder %s78, %s79
      %p91 = scmp.eq.s32.totalorder %s27, 3
      %p92 = por %p90, %p91
      %p94 = scmp.ne.s32.totalorder %s79, %s93
      %p95 = scmp.eq.s32.totalorder %s27, 0
      %p96 = por %p94, %p95
      %s98 = sadd.s32 %s97, 1
      %p101 = scmp.eq.s32.totalorder %s21, 3
      %p102 = scmp.ne.s32.totalorder %s97, %s99
      %p103 = scmp.eq.s32.totalorder %s21, 0
      %p104 = por %p102, %p103
      %p105 = scmp.ne.s32.totalorder %s97, %s99
      %p106 = scmp.eq.s32.totalorder %s26, 3
      %p107 = por %p105, %p106
      %p108 = scmp.ne.s32.totalorder %s99, %s100
      %p109 = scmp.eq.s32.totalorder %s26, 0
      %p110 = por %p108, %p109
      %p111 = scmp.ne.s32.totalorder %s99, %s100
      %p112 = scmp.eq.s32.totalorder %s27, 3
      %p113 = por %p111, %p112
      %p115 = scmp.ne.s32.totalorder %s100, %s114
      %p116 = scmp.eq.s32.totalorder %s27, 0
      %p117 = por %p115, %p116
      %s119 = sadd.s32 %s118, 1
      %p122 = scmp.eq.s32.totalorder %s21, 3
      %p123 = scmp.ne.s32.totalorder %s118, %s120
      %p124 = scmp.eq.s32.totalorder %s21, 0
      %p125 = por %p123, %p124
      %p126 = scmp.ne.s32.totalorder %s118, %s120
      %p127 = scmp.eq.s32.totalorder %s26, 3
      %p128 = por %p126, %p127
      %p129 = scmp.ne.s32.totalorder %s120, %s121
      %p130 = scmp.eq.s32.totalorder %s26, 0
      %p131 = por %p129, %p130
      %p132 = scmp.ne.s32.totalorder %s120, %s121
      %p133 = scmp.eq.s32.totalorder %s27, 3
      %p134 = por %p132, %p133
      %p136 = scmp.ne.s32.totalorder %s121, %s135
      %p137 = scmp.eq.s32.totalorder %s27, 0
      %p138 = por %p136, %p137
      %s140 = sadd.s32 %s139, 1
      %p143 = scmp.eq.s32.totalorder %s21, 3
      %p144 = scmp.ne.s32.totalorder %s139, %s141
      %p145 = scmp.eq.s32.totalorder %s21, 0
      %p146 = por %p144, %p145
      %p147 = scmp.ne.s32.totalorder %s139, %s141
      %p148 = scmp.eq.s32.totalorder %s26, 3
      %p149 = por %p147, %p148
      %p150 = scmp.ne.s32.totalorder %s141, %s142
      %p151 = scmp.eq.s32.totalorder %s26, 0
      %p152 = por %p150, %p151
      %p153 = scmp.ne.s32.totalorder %s141, %s142
      %p154 = scmp.eq.s32.totalorder %s27, 3
      %p155 = por %p153, %p154
      %p157 = scmp.ne.s32.totalorder %s142, %s156
      %p158 = scmp.eq.s32.totalorder %s27, 0
      %p159 = por %p157, %p158
      %s161 = sadd.s32 %s160, 1
      %p164 = scmp.eq.s32.totalorder %s21, 3
      %p165 = scmp.ne.s32.totalorder %s160, %s162
      %p166 = scmp.eq.s32.totalorder %s21, 0
      %p167 = por %p165, %p166
      %p168 = scmp.ne.s32.totalorder %s160, %s162
      %p169 = scmp.eq.s32.totalorder %s26, 3
      %p170 = por %p168, %p169
      %p171 = scmp.ne.s32.totalorder %s162, %s163
      %p172 = scmp.eq.s32.totalorder %s26, 0
      %p173 = por %p171, %p172
      %p174 = scmp.ne.s32.totalorder %s162, %s163
      %p175 = scmp.eq.s32.totalorder %s27, 3
      %p176 = por %p174, %p175
      %p178 = scmp.ne.s32.totalorder %s163, %s177
      %p179 = scmp.eq.s32.totalorder %s27, 0
      %p180 = por %p178, %p179
      %s181 = ssub.s32 %s21, %s28
      %p182 = scmp.eq.s32.totalorder %s181, 0
      %s184 = sadd.s32 %s183, 1
      %s185 = scalar_select %p182, %s183, %s184
      %p188 = pneg %p182
      %p189 = scmp.eq.s32.totalorder %s21, 3
      %p190 = por %p188, %p189
      %p191 = scmp.ne.s32.totalorder %s183, %s186
      %p192 = scmp.eq.s32.totalorder %s21, 0
      %p193 = por %p191, %p192
      %p194 = scmp.ne.s32.totalorder %s183, %s186
      %p195 = scmp.eq.s32.totalorder %s26, 3
      %p196 = por %p194, %p195
      %p197 = scmp.ne.s32.totalorder %s186, %s187
      %p198 = scmp.eq.s32.totalorder %s26, 0
      %p199 = por %p197, %p198
      %p200 = scmp.ne.s32.totalorder %s186, %s187
      %p201 = scmp.eq.s32.totalorder %s27, 3
      %p202 = por %p200, %p201
      %p204 = scmp.ne.s32.totalorder %s187, %s203
      %p205 = scmp.eq.s32.totalorder %s27, 0
      %p206 = por %p204, %p205
      %s207 = ssub.s32 %s21, %s28
      %p208 = scmp.eq.s32.totalorder %s207, 0
      %s210 = sadd.s32 %s209, 1
      %s211 = scalar_select %p208, %s209, %s210
      %p214 = pneg %p208
      %p215 = scmp.eq.s32.totalorder %s21, 3
      %p216 = por %p214, %p215
      %p217 = scmp.ne.s32.totalorder %s209, %s212
      %p218 = scmp.eq.s32.totalorder %s21, 0
      %p219 = por %p217, %p218
      %p220 = scmp.ne.s32.totalorder %s209, %s212
      %p221 = scmp.eq.s32.totalorder %s26, 3
      %p222 = por %p220, %p221
      %p223 = scmp.ne.s32.totalorder %s212, %s213
      %p224 = scmp.eq.s32.totalorder %s26, 0
      %p225 = por %p223, %p224
      %p226 = scmp.ne.s32.totalorder %s212, %s213
      %p227 = scmp.eq.s32.totalorder %s27, 3
      %p228 = por %p226, %p227
      %p230 = scmp.ne.s32.totalorder %s213, %s229
      %p231 = scmp.eq.s32.totalorder %s27, 0
      %p232 = por %p230, %p231
      %p233 = scmp.le.s32.totalorder 1, %s21
      %p234 = scmp.lt.s32.totalorder %s21, 5
      %p235 = pnand %p233, %p234
      %p236 = pneg %p235
      // Predicated region
      $region9: #{tpu_custom_call.1} parent=5 // pred_check
        _
      $region10: #{tpu_custom_call.1} parent=5 // pred_check_branch
        %238 = sbr.rel (%p235) target = $region12
      $region11: #{tpu_custom_call.1} parent=5 // pred_region
        %s239 = ssub.s32 %s21, 1
        // Predicated region
        $region13: #{tpu_custom_call.1} parent=11 // pred_check
          %p240 = pneg %p68
        $region14: #{tpu_custom_call.1} parent=11 // pred_check_branch
          %242 = sbr.rel (%p240) target = $region16
        $region15: #{tpu_custom_call.1} parent=11 // pred_region
          _
        $region16: #{tpu_custom_call.1} parent=11 // pred_fallthru
          _
        // Predicated region
        $region17: #{tpu_custom_call.1} parent=11 // pred_check
          %p243 = pneg %p89
        $region18: #{tpu_custom_call.1} parent=11 // pred_check_branch
          %245 = sbr.rel (%p243) target = $region20
        $region19: #{tpu_custom_call.1} parent=11 // pred_region
          _
        $region20: #{tpu_custom_call.1} parent=11 // pred_fallthru
          _
        // Predicated region
        $region21: #{tpu_custom_call.1} parent=11 // pred_check
          %p246 = pneg %p110
        $region22: #{tpu_custom_call.1} parent=11 // pred_check_branch
          %248 = sbr.rel (%p246) target = $region24
        $region23: #{tpu_custom_call.1} parent=11 // pred_region
          _
        $region24: #{tpu_custom_call.1} parent=11 // pred_fallthru
          _
        // Predicated region
        $region25: #{tpu_custom_call.1} parent=11 // pred_check
          %p249 = pneg %p131
        $region26: #{tpu_custom_call.1} parent=11 // pred_check_branch
          %251 = sbr.rel (%p249) target = $region28
        $region27: #{tpu_custom_call.1} parent=11 // pred_region
          _
        $region28: #{tpu_custom_call.1} parent=11 // pred_fallthru
          _
        // Predicated region
        $region29: #{tpu_custom_call.1} parent=11 // pred_check
          %p252 = pneg %p152
        $region30: #{tpu_custom_call.1} parent=11 // pred_check_branch
          %254 = sbr.rel (%p252) target = $region32
        $region31: #{tpu_custom_call.1} parent=11 // pred_region
          _
        $region32: #{tpu_custom_call.1} parent=11 // pred_fallthru
          _
        // Predicated region
        $region33: #{tpu_custom_call.1} parent=11 // pred_check
          %p255 = pneg %p173
        $region34: #{tpu_custom_call.1} parent=11 // pred_check_branch
          %257 = sbr.rel (%p255) target = $region36
        $region35: #{tpu_custom_call.1} parent=11 // pred_region
          _
        $region36: #{tpu_custom_call.1} parent=11 // pred_fallthru
          _
      $region12: #{tpu_custom_call.1} parent=5 // pred_fallthru
        _
      %p258 = scmp.lt.s32.totalorder %s21, 4
      // Predicated region
      $region37: #{tpu_custom_call.1} parent=5 // pred_check
        %p259 = pneg %p258
      $region38: #{tpu_custom_call.1} parent=5 // pred_check_branch
        %261 = sbr.rel (%p259) target = $region40
      $region39: #{tpu_custom_call.1} parent=5 // pred_region
        // Predicated region
        $region41: #{tpu_custom_call.1} parent=39 // pred_check
          %p262 = pneg %p41
        $region42: #{tpu_custom_call.1} parent=39 // pred_check_branch
          %264 = sbr.rel (%p262) target = $region44
        $region43: #{tpu_custom_call.1} parent=39 // pred_region
          %p265 = scmp.lt.s32.totalorder %s21, 3
          %s266 = scalar_select %p265, %s21, 3
          %s267 = smul.addr %s266, 4
          %s268 = scalar_lea.vmem %s0, %s267
        $region44: #{tpu_custom_call.1} parent=39 // pred_fallthru
          _
      $region40: #{tpu_custom_call.1} parent=5 // pred_fallthru
        _
      %p269 = scmp.le.s32.totalorder 1, %s21
      %p270 = scmp.lt.s32.totalorder %s21, 5
      %p271 = pnand %p269, %p270
      %p272 = pneg %p271
      // Predicated region
      $region45: #{tpu_custom_call.1} parent=5 // pred_check
        _
      $region46: #{tpu_custom_call.1} parent=5 // pred_check_branch
        %274 = sbr.rel (%p271) target = $region48
      $region47: #{tpu_custom_call.1} parent=5 // pred_region
        %s275 = ssub.s32 %s21, 1
        %p276 = scmp.lt.s32.totalorder %s26, 3
        %s277 = scalar_select %p276, %s26, 3
        %s278 = smul.addr %s277, 4
        %s279 = scalar_lea.vmem %s0, %s278
        %p280 = pneg %p47
        %p281 = pneg %p44
        %p282 = pneg %p68
        %p283 = pneg %p65
        %p284 = pneg %p89
        %p285 = pneg %p86
        %p286 = pneg %p110
        %p287 = pneg %p107
        %p288 = pneg %p131
        %p289 = pneg %p128
        %p290 = pneg %p152
        %p291 = pneg %p149
        %p292 = pneg %p173
        %p293 = pneg %p170
        %p294 = pneg %p199
        %p295 = pneg %p196
        %s296 = sand.u32 %s186, 1
        %s297 = scalar_lea.sflag [#allocation3], %s296
        %s298 = sand.u32 %s186, 1
        %s299 = smul.addr %s298, 8
        %s300 = scalar_lea.vmem [#allocation2], %s299
        %p301 = pneg %p225
        %p302 = pneg %p222
        %s303 = sand.u32 %s212, 1
        %s304 = scalar_lea.sflag [#allocation5], %s303
        %s305 = sand.u32 %s212, 1
        %s306 = smul.addr %s305, 8
        %s307 = scalar_lea.vmem [#allocation4], %s306
        %p308 = scmp.lt.s32.totalorder %s26, 3
        %s309 = scalar_select %p308, %s26, 3
        %s310 = smul.addr %s309, 4
        %s311 = scalar_lea.vmem %s0, %s310
        %v312 = vld [vmem:[%s311] sm:$0xf]
        %v313 = vlaneseq
        %v314 = vand.u32 %v313, 127
        %vm315 = vcmp.lt.s32.totalorder %v314, 0
        %v316 = vsub.s32 0, %v314
        %v317 = vsel %vm315, %v316, %v314
        %v318 = vshrl.u32 %v317, 5
        %v319 = vand.u32 %v317, 31
        %v320 = vsub.s32 0, %v319
        %v321 = vsel %vm315, %v320, %v319
        %vm322 = vcmp.ne.s32.totalorder %v321, 0
        %vm323 = vcmp.lt.s32.totalorder %v321, 0
        %vm324 = vmand %vm323, %vm322
        %v325 = vadd.s32 %v321, 32
        %v326 = vsel %vm324, %v325, %v321
        %v327 = vld [vmem:[%s2] sm:$0xff]
        %v328 = vld [vmem:[%s1] sm:$0xff]
        %329 = vrot.lane.b32.xlu0 %v312, 8
        %v330 = vpop.permute.xlu0 %329
        %vm331 = vcmp.ge.s32.totalorder %v326, 8
        %v332 = vsel %vm331, 1, 0
        %vm333 = vcmp.eq.s32.totalorder %v332, 1
        %v334 = vsel %vm333, %v330, 0.0
        %vm335 = vcmask 31744
        %v337 = vsel %vm335, %v328, 0
        %vm339 = vcmask 1043456
        %v341 = vsel %vm339, %v334, 0
        %343 = vmatprep.subr.mxu0 0.0
        %344 = vmatpush1.msra.mxu0 0.0
        %345 = vmatprep.subr.mxu0 0.0
        %346 = vmatpush1.msra.mxu0 0.0
        %347 = vmatprep.subr.mxu0 0.0
        %348 = vmatpush1.msra.mxu0 0.0
        %349 = vmatprep.subr.mxu0 0.0
        %350 = vmatpush1.msra.mxu0 0.0
        %351 = vmatprep.subr.mxu0 0.0
        %352 = vmatpush1.msra.mxu0 0.0
        %353 = vmatprep.subr.mxu0 0.0
        %354 = vmatpush1.msra.mxu0 0.0
        %355 = vmatprep.subr.mxu0 0.0
        %356 = vmatpush1.msra.mxu0 0.0
        %357 = vmatprep.subr.mxu0 0.0
        %358 = vmatpush1.msra.mxu0 0.0
        %359 = vmatprep.subr.mxu0 0.0
        %360 = vmatpush1.msra.mxu0 0.0
        %361 = vmatprep.subr.mxu0 0.0
        %362 = vmatpush1.msra.mxu0 0.0
        %363 = vmatprep.subr.mxu0 0.0
        %364 = vmatpush1.msra.mxu0 0.0
        %365 = vmatprep.subr.mxu0 0.0
        %366 = vmatpush1.msra.mxu0 0.0
        %367 = vmatprep.subr.mxu0 0.0
        %368 = vmatpush1.msra.mxu0 0.0
        %369 = vmatprep.subr.mxu0 0.0
        %370 = vmatpush1.msra.mxu0 0.0
        %371 = vmatprep.subr.mxu0 0.0
        %372 = vmatpush1.msra.mxu0 0.0
        %373 = vmatprep.subr.mxu0 0.0
        %374 = vmatpush1.msra.mxu0 %v341
        %375 = vmatprep.subr.mxu0 0.0
        %376 = vmatpush2.msra.mxu0 0.0
        %377 = vmatprep.subr.mxu0 0.0
        %378 = vmatpush2.msra.mxu0 0.0
        %379 = vmatprep.subr.mxu0 0.0
        %380 = vmatpush2.msra.mxu0 0.0
        %381 = vmatprep.subr.mxu0 0.0
        %382 = vmatpush2.msra.mxu0 0.0
        %383 = vmatprep.subr.mxu0 0.0
        %384 = vmatpush2.msra.mxu0 0.0
        %385 = vmatprep.subr.mxu0 0.0
        %386 = vmatpush2.msra.mxu0 0.0
        %387 = vmatprep.subr.mxu0 0.0
        %388 = vmatpush2.msra.mxu0 0.0
        %389 = vmatprep.subr.mxu0 0.0
        %390 = vmatpush2.msra.mxu0 0.0
        %391 = vmatprep.subr.mxu0 0.0
        %392 = vmatpush2.msra.mxu0 0.0
        %393 = vmatprep.subr.mxu0 0.0
        %394 = vmatpush2.msra.mxu0 0.0
        %395 = vmatprep.subr.mxu0 0.0
        %396 = vmatpush2.msra.mxu0 0.0
        %397 = vmatprep.subr.mxu0 0.0
        %398 = vmatpush2.msra.mxu0 0.0
        %399 = vmatprep.subr.mxu0 0.0
        %400 = vmatpush2.msra.mxu0 0.0
        %401 = vmatprep.subr.mxu0 0.0
        %402 = vmatpush2.msra.mxu0 0.0
        %403 = vmatprep.subr.mxu0 0.0
        %404 = vmatpush2.msra.mxu0 0.0
        %405 = vmatprep.subr.mxu0 0.0
        %406 = vmatpush2.msra.mxu0 0.0
        %407 = vmatprep.mubr.f32.mxu0 0.0
        %408 = vmatmul.mubr.f32.gmra.mxu0 %v337
        %v409 = vpop.f32.mrf.mxu0
        %v410 = vadd.f32 0.0, %v409
        %v411 = vpop.f32.mrf.mxu0
        %412 = vdwg.mxu0
        %414 = vset.pattern.permute.xlu0 0
        %415 = vperm.xlu0 %414, %v327
        %v416 = vpop.permute.xlu0 %415
        %v418 = vadd.f32 %v416, %v410
        %s419 = scalar_lea.vmem %s1, 8
        %v420 = vld [vmem:[%s419] sm:$0xff]
        %421 = vrot.lane.b32.xlu0 %v312, 4
        %v422 = vpop.permute.xlu0 %421
        %vm423 = vcmp.ge.s32.totalorder %v326, 4
        %v424 = vsel %vm423, 1, 0
        %vm425 = vcmp.eq.s32.totalorder %v424, 1
        %v426 = vsel %vm425, %v422, 0.0
        %v428 = vsel %vm335, %v420, 0
        %v431 = vsel %vm339, %v426, 0
        %433 = vmatprep.subr.mxu0 0.0
        %434 = vmatpush1.msra.mxu0 0.0
        %435 = vmatprep.subr.mxu0 0.0
        %436 = vmatpush1.msra.mxu0 0.0
        %437 = vmatprep.subr.mxu0 0.0
        %438 = vmatpush1.msra.mxu0 0.0
        %439 = vmatprep.subr.mxu0 0.0
        %440 = vmatpush1.msra.mxu0 0.0
        %441 = vmatprep.subr.mxu0 0.0
        %442 = vmatpush1.msra.mxu0 0.0
        %443 = vmatprep.subr.mxu0 0.0
        %444 = vmatpush1.msra.mxu0 0.0
        %445 = vmatprep.subr.mxu0 0.0
        %446 = vmatpush1.msra.mxu0 0.0
        %447 = vmatprep.subr.mxu0 0.0
        %448 = vmatpush1.msra.mxu0 0.0
        %449 = vmatprep.subr.mxu0 0.0
        %450 = vmatpush1.msra.mxu0 0.0
        %451 = vmatprep.subr.mxu0 0.0
        %452 = vmatpush1.msra.mxu0 0.0
        %453 = vmatprep.subr.mxu0 0.0
        %454 = vmatpush1.msra.mxu0 0.0
        %455 = vmatprep.subr.mxu0 0.0
        %456 = vmatpush1.msra.mxu0 0.0
        %457 = vmatprep.subr.mxu0 0.0
        %458 = vmatpush1.msra.mxu0 0.0
        %459 = vmatprep.subr.mxu0 0.0
        %460 = vmatpush1.msra.mxu0 0.0
        %461 = vmatprep.subr.mxu0 0.0
        %462 = vmatpush1.msra.mxu0 0.0
        %463 = vmatprep.subr.mxu0 0.0
        %464 = vmatpush1.msra.mxu0 %v431
        %465 = vmatprep.subr.mxu0 0.0
        %466 = vmatpush2.msra.mxu0 0.0
        %467 = vmatprep.subr.mxu0 0.0
        %468 = vmatpush2.msra.mxu0 0.0
        %469 = vmatprep.subr.mxu0 0.0
        %470 = vmatpush2.msra.mxu0 0.0
        %471 = vmatprep.subr.mxu0 0.0
        %472 = vmatpush2.msra.mxu0 0.0
        %473 = vmatprep.subr.mxu0 0.0
        %474 = vmatpush2.msra.mxu0 0.0
        %475 = vmatprep.subr.mxu0 0.0
        %476 = vmatpush2.msra.mxu0 0.0
        %477 = vmatprep.subr.mxu0 0.0
        %478 = vmatpush2.msra.mxu0 0.0
        %479 = vmatprep.subr.mxu0 0.0
        %480 = vmatpush2.msra.mxu0 0.0
        %481 = vmatprep.subr.mxu0 0.0
        %482 = vmatpush2.msra.mxu0 0.0
        %483 = vmatprep.subr.mxu0 0.0
        %484 = vmatpush2.msra.mxu0 0.0
        %485 = vmatprep.subr.mxu0 0.0
        %486 = vmatpush2.msra.mxu0 0.0
        %487 = vmatprep.subr.mxu0 0.0
        %488 = vmatpush2.msra.mxu0 0.0
        %489 = vmatprep.subr.mxu0 0.0
        %490 = vmatpush2.msra.mxu0 0.0
        %491 = vmatprep.subr.mxu0 0.0
        %492 = vmatpush2.msra.mxu0 0.0
        %493 = vmatprep.subr.mxu0 0.0
        %494 = vmatpush2.msra.mxu0 0.0
        %495 = vmatprep.subr.mxu0 0.0
        %496 = vmatpush2.msra.mxu0 0.0
        %497 = vmatprep.mubr.f32.mxu0 0.0
        %498 = vmatmul.mubr.f32.gmra.mxu0 %v428
        %v499 = vpop.f32.mrf.mxu0
        %v500 = vadd.f32 0.0, %v499
        %v501 = vpop.f32.mrf.mxu0
        %502 = vdwg.mxu0
        %v503 = vadd.f32 %v418, %v500
        %s504 = scalar_lea.vmem %s1, 16
        %v505 = vld [vmem:[%s504] sm:$0xff]
        %v507 = vsel %vm335, %v505, 0
        %v510 = vsel %vm339, %v312, 0
        %512 = vmatprep.subr.mxu0 0.0
        %513 = vmatpush1.msra.mxu0 0.0
        %514 = vmatprep.subr.mxu0 0.0
        %515 = vmatpush1.msra.mxu0 0.0
        %516 = vmatprep.subr.mxu0 0.0
        %517 = vmatpush1.msra.mxu0 0.0
        %518 = vmatprep.subr.mxu0 0.0
        %519 = vmatpush1.msra.mxu0 0.0
        %520 = vmatprep.subr.mxu0 0.0
        %521 = vmatpush1.msra.mxu0 0.0
        %522 = vmatprep.subr.mxu0 0.0
        %523 = vmatpush1.msra.mxu0 0.0
        %524 = vmatprep.subr.mxu0 0.0
        %525 = vmatpush1.msra.mxu0 0.0
        %526 = vmatprep.subr.mxu0 0.0
        %527 = vmatpush1.msra.mxu0 0.0
        %528 = vmatprep.subr.mxu0 0.0
        %529 = vmatpush1.msra.mxu0 0.0
        %530 = vmatprep.subr.mxu0 0.0
        %531 = vmatpush1.msra.mxu0 0.0
        %532 = vmatprep.subr.mxu0 0.0
        %533 = vmatpush1.msra.mxu0 0.0
        %534 = vmatprep.subr.mxu0 0.0
        %535 = vmatpush1.msra.mxu0 0.0
        %536 = vmatprep.subr.mxu0 0.0
        %537 = vmatpush1.msra.mxu0 0.0
        %538 = vmatprep.subr.mxu0 0.0
        %539 = vmatpush1.msra.mxu0 0.0
        %540 = vmatprep.subr.mxu0 0.0
        %541 = vmatpush1.msra.mxu0 0.0
        %542 = vmatprep.subr.mxu0 0.0
        %543 = vmatpush1.msra.mxu0 %v510
        %544 = vmatprep.subr.mxu0 0.0
        %545 = vmatpush2.msra.mxu0 0.0
        %546 = vmatprep.subr.mxu0 0.0
        %547 = vmatpush2.msra.mxu0 0.0
        %548 = vmatprep.subr.mxu0 0.0
        %549 = vmatpush2.msra.mxu0 0.0
        %550 = vmatprep.subr.mxu0 0.0
        %551 = vmatpush2.msra.mxu0 0.0
        %552 = vmatprep.subr.mxu0 0.0
        %553 = vmatpush2.msra.mxu0 0.0
        %554 = vmatprep.subr.mxu0 0.0
        %555 = vmatpush2.msra.mxu0 0.0
        %556 = vmatprep.subr.mxu0 0.0
        %557 = vmatpush2.msra.mxu0 0.0
        %558 = vmatprep.subr.mxu0 0.0
        %559 = vmatpush2.msra.mxu0 0.0
        %560 = vmatprep.subr.mxu0 0.0
        %561 = vmatpush2.msra.mxu0 0.0
        %562 = vmatprep.subr.mxu0 0.0
        %563 = vmatpush2.msra.mxu0 0.0
        %564 = vmatprep.subr.mxu0 0.0
        %565 = vmatpush2.msra.mxu0 0.0
        %566 = vmatprep.subr.mxu0 0.0
        %567 = vmatpush2.msra.mxu0 0.0
        %568 = vmatprep.subr.mxu0 0.0
        %569 = vmatpush2.msra.mxu0 0.0
        %570 = vmatprep.subr.mxu0 0.0
        %571 = vmatpush2.msra.mxu0 0.0
        %572 = vmatprep.subr.mxu0 0.0
        %573 = vmatpush2.msra.mxu0 0.0
        %574 = vmatprep.subr.mxu0 0.0
        %575 = vmatpush2.msra.mxu0 0.0
        %576 = vmatprep.mubr.f32.mxu0 0.0
        %577 = vmatmul.mubr.f32.gmra.mxu0 %v507
        %v578 = vpop.f32.mrf.mxu0
        %v579 = vadd.f32 0.0, %v578
        %v580 = vpop.f32.mrf.mxu0
        %581 = vdwg.mxu0
        %v582 = vadd.f32 %v503, %v579
        %v583 = vmax.f32 %v582, 0.0
        %v584 = vld [vmem:[%s3] sm:$0xff]
        %v585 = vld [vmem:[%s4] sm:$0xff]
        %587 = vset.pattern.permute.xlu0 0
        %588 = vperm.xlu0 %587, %v585
        %v589 = vpop.permute.xlu0 %588
        %v592 = vsel %vm335, %v584, 0
        %594 = vmatprep.subr.mxu0 0.0
        %595 = vmatpush1.msra.mxu0 0.0
        %596 = vmatprep.subr.mxu0 0.0
        %597 = vmatpush1.msra.mxu0 0.0
        %598 = vmatprep.subr.mxu0 0.0
        %599 = vmatpush1.msra.mxu0 0.0
        %600 = vmatprep.subr.mxu0 0.0
        %601 = vmatpush1.msra.mxu0 0.0
        %602 = vmatprep.subr.mxu0 0.0
        %603 = vmatpush1.msra.mxu0 0.0
        %604 = vmatprep.subr.mxu0 0.0
        %605 = vmatpush1.msra.mxu0 0.0
        %606 = vmatprep.subr.mxu0 0.0
        %607 = vmatpush1.msra.mxu0 0.0
        %608 = vmatprep.subr.mxu0 0.0
        %609 = vmatpush1.msra.mxu0 0.0
        %610 = vmatprep.subr.mxu0 0.0
        %611 = vmatpush1.msra.mxu0 0.0
        %612 = vmatprep.subr.mxu0 0.0
        %613 = vmatpush1.msra.mxu0 0.0
        %614 = vmatprep.subr.mxu0 0.0
        %615 = vmatpush1.msra.mxu0 0.0
        %616 = vmatprep.subr.mxu0 0.0
        %617 = vmatpush1.msra.mxu0 0.0
        %618 = vmatprep.subr.mxu0 0.0
        %619 = vmatpush1.msra.mxu0 0.0
        %620 = vmatprep.subr.mxu0 0.0
        %621 = vmatpush1.msra.mxu0 0.0
        %622 = vmatprep.subr.mxu0 0.0
        %623 = vmatpush1.msra.mxu0 0.0
        %624 = vmatprep.subr.mxu0 0.0
        %625 = vmatpush1.msra.mxu0 %v510
        %626 = vmatprep.subr.mxu0 0.0
        %627 = vmatpush2.msra.mxu0 0.0
        %628 = vmatprep.subr.mxu0 0.0
        %629 = vmatpush2.msra.mxu0 0.0
        %630 = vmatprep.subr.mxu0 0.0
        %631 = vmatpush2.msra.mxu0 0.0
        %632 = vmatprep.subr.mxu0 0.0
        %633 = vmatpush2.msra.mxu0 0.0
        %634 = vmatprep.subr.mxu0 0.0
        %635 = vmatpush2.msra.mxu0 0.0
        %636 = vmatprep.subr.mxu0 0.0
        %637 = vmatpush2.msra.mxu0 0.0
        %638 = vmatprep.subr.mxu0 0.0
        %639 = vmatpush2.msra.mxu0 0.0
        %640 = vmatprep.subr.mxu0 0.0
        %641 = vmatpush2.msra.mxu0 0.0
        %642 = vmatprep.subr.mxu0 0.0
        %643 = vmatpush2.msra.mxu0 0.0
        %644 = vmatprep.subr.mxu0 0.0
        %645 = vmatpush2.msra.mxu0 0.0
        %646 = vmatprep.subr.mxu0 0.0
        %647 = vmatpush2.msra.mxu0 0.0
        %648 = vmatprep.subr.mxu0 0.0
        %649 = vmatpush2.msra.mxu0 0.0
        %650 = vmatprep.subr.mxu0 0.0
        %651 = vmatpush2.msra.mxu0 0.0
        %652 = vmatprep.subr.mxu0 0.0
        %653 = vmatpush2.msra.mxu0 0.0
        %654 = vmatprep.subr.mxu0 0.0
        %655 = vmatpush2.msra.mxu0 0.0
        %656 = vmatprep.subr.mxu0 0.0
        %657 = vmatpush2.msra.mxu0 0.0
        %658 = vmatprep.mubr.f32.mxu0 0.0
        %659 = vmatmul.mubr.f32.gmra.mxu0 %v592
        %v660 = vpop.f32.mrf.mxu0
        %v661 = vadd.f32 %v589, %v660
        %v662 = vpop.f32.mrf.mxu0
        %663 = vdwg.mxu0
        %v664 = vld [vmem:[%s6] sm:$0xff]
        %v665 = vld [vmem:[%s5] sm:$0xff]
        %666 = vrot.lane.b32.xlu0 %v583, 8
        %v667 = vpop.permute.xlu0 %666
        %v668 = vsel %vm333, %v667, 0.0
        %vm669 = vcmask 64512
        %v671 = vsel %vm669, %v665, 0
        %673 = vmatprep.subr.mxu0 0.0
        %674 = vmatpush1.msra.mxu0 0.0
        %675 = vmatprep.subr.mxu0 0.0
        %676 = vmatpush1.msra.mxu0 0.0
        %677 = vmatprep.subr.mxu0 0.0
        %678 = vmatpush1.msra.mxu0 0.0
        %679 = vmatprep.subr.mxu0 0.0
        %680 = vmatpush1.msra.mxu0 0.0
        %681 = vmatprep.subr.mxu0 0.0
        %682 = vmatpush1.msra.mxu0 0.0
        %683 = vmatprep.subr.mxu0 0.0
        %684 = vmatpush1.msra.mxu0 0.0
        %685 = vmatprep.subr.mxu0 0.0
        %686 = vmatpush1.msra.mxu0 0.0
        %687 = vmatprep.subr.mxu0 0.0
        %688 = vmatpush1.msra.mxu0 0.0
        %689 = vmatprep.subr.mxu0 0.0
        %690 = vmatpush1.msra.mxu0 0.0
        %691 = vmatprep.subr.mxu0 0.0
        %692 = vmatpush1.msra.mxu0 0.0
        %693 = vmatprep.subr.mxu0 0.0
        %694 = vmatpush1.msra.mxu0 0.0
        %695 = vmatprep.subr.mxu0 0.0
        %696 = vmatpush1.msra.mxu0 0.0
        %697 = vmatprep.subr.mxu0 0.0
        %698 = vmatpush1.msra.mxu0 0.0
        %699 = vmatprep.subr.mxu0 0.0
        %700 = vmatpush1.msra.mxu0 0.0
        %701 = vmatprep.subr.mxu0 0.0
        %702 = vmatpush1.msra.mxu0 0.0
        %703 = vmatprep.subr.mxu0 0.0
        %704 = vmatpush1.msra.mxu0 %v668
        %705 = vmatprep.subr.mxu0 0.0
        %706 = vmatpush2.msra.mxu0 0.0
        %707 = vmatprep.subr.mxu0 0.0
        %708 = vmatpush2.msra.mxu0 0.0
        %709 = vmatprep.subr.mxu0 0.0
        %710 = vmatpush2.msra.mxu0 0.0
        %711 = vmatprep.subr.mxu0 0.0
        %712 = vmatpush2.msra.mxu0 0.0
        %713 = vmatprep.subr.mxu0 0.0
        %714 = vmatpush2.msra.mxu0 0.0
        %715 = vmatprep.subr.mxu0 0.0
        %716 = vmatpush2.msra.mxu0 0.0
        %717 = vmatprep.subr.mxu0 0.0
        %718 = vmatpush2.msra.mxu0 0.0
        %719 = vmatprep.subr.mxu0 0.0
        %720 = vmatpush2.msra.mxu0 0.0
        %721 = vmatprep.subr.mxu0 0.0
        %722 = vmatpush2.msra.mxu0 0.0
        %723 = vmatprep.subr.mxu0 0.0
        %724 = vmatpush2.msra.mxu0 0.0
        %725 = vmatprep.subr.mxu0 0.0
        %726 = vmatpush2.msra.mxu0 0.0
        %727 = vmatprep.subr.mxu0 0.0
        %728 = vmatpush2.msra.mxu0 0.0
        %729 = vmatprep.subr.mxu0 0.0
        %730 = vmatpush2.msra.mxu0 0.0
        %731 = vmatprep.subr.mxu0 0.0
        %732 = vmatpush2.msra.mxu0 0.0
        %733 = vmatprep.subr.mxu0 0.0
        %734 = vmatpush2.msra.mxu0 0.0
        %735 = vmatprep.subr.mxu0 0.0
        %736 = vmatpush2.msra.mxu0 0.0
        %737 = vmatprep.mubr.f32.mxu0 0.0
        %738 = vmatmul.mubr.f32.gmra.mxu0 %v671
        %v739 = vpop.f32.mrf.mxu0
        %v740 = vadd.f32 0.0, %v739
        %v741 = vpop.f32.mrf.mxu0
        %742 = vdwg.mxu0
        %744 = vset.pattern.permute.xlu0 0
        %745 = vperm.xlu0 %744, %v664
        %v746 = vpop.permute.xlu0 %745
        %v748 = vadd.f32 %v746, %v740
        %s749 = scalar_lea.vmem %s5, 8
        %v750 = vld [vmem:[%s749] sm:$0xff]
        %751 = vrot.lane.b32.xlu0 %v583, 4
        %v752 = vpop.permute.xlu0 %751
        %v753 = vsel %vm425, %v752, 0.0
        %v755 = vsel %vm669, %v750, 0
        %757 = vmatprep.subr.mxu0 0.0
        %758 = vmatpush1.msra.mxu0 0.0
        %759 = vmatprep.subr.mxu0 0.0
        %760 = vmatpush1.msra.mxu0 0.0
        %761 = vmatprep.subr.mxu0 0.0
        %762 = vmatpush1.msra.mxu0 0.0
        %763 = vmatprep.subr.mxu0 0.0
        %764 = vmatpush1.msra.mxu0 0.0
        %765 = vmatprep.subr.mxu0 0.0
        %766 = vmatpush1.msra.mxu0 0.0
        %767 = vmatprep.subr.mxu0 0.0
        %768 = vmatpush1.msra.mxu0 0.0
        %769 = vmatprep.subr.mxu0 0.0
        %770 = vmatpush1.msra.mxu0 0.0
        %771 = vmatprep.subr.mxu0 0.0
        %772 = vmatpush1.msra.mxu0 0.0
        %773 = vmatprep.subr.mxu0 0.0
        %774 = vmatpush1.msra.mxu0 0.0
        %775 = vmatprep.subr.mxu0 0.0
        %776 = vmatpush1.msra.mxu0 0.0
        %777 = vmatprep.subr.mxu0 0.0
        %778 = vmatpush1.msra.mxu0 0.0
        %779 = vmatprep.subr.mxu0 0.0
        %780 = vmatpush1.msra.mxu0 0.0
        %781 = vmatprep.subr.mxu0 0.0
        %782 = vmatpush1.msra.mxu0 0.0
        %783 = vmatprep.subr.mxu0 0.0
        %784 = vmatpush1.msra.mxu0 0.0
        %785 = vmatprep.subr.mxu0 0.0
        %786 = vmatpush1.msra.mxu0 0.0
        %787 = vmatprep.subr.mxu0 0.0
        %788 = vmatpush1.msra.mxu0 %v753
        %789 = vmatprep.subr.mxu0 0.0
        %790 = vmatpush2.msra.mxu0 0.0
        %791 = vmatprep.subr.mxu0 0.0
        %792 = vmatpush2.msra.mxu0 0.0
        %793 = vmatprep.subr.mxu0 0.0
        %794 = vmatpush2.msra.mxu0 0.0
        %795 = vmatprep.subr.mxu0 0.0
        %796 = vmatpush2.msra.mxu0 0.0
        %797 = vmatprep.subr.mxu0 0.0
        %798 = vmatpush2.msra.mxu0 0.0
        %799 = vmatprep.subr.mxu0 0.0
        %800 = vmatpush2.msra.mxu0 0.0
        %801 = vmatprep.subr.mxu0 0.0
        %802 = vmatpush2.msra.mxu0 0.0
        %803 = vmatprep.subr.mxu0 0.0
        %804 = vmatpush2.msra.mxu0 0.0
        %805 = vmatprep.subr.mxu0 0.0
        %806 = vmatpush2.msra.mxu0 0.0
        %807 = vmatprep.subr.mxu0 0.0
        %808 = vmatpush2.msra.mxu0 0.0
        %809 = vmatprep.subr.mxu0 0.0
        %810 = vmatpush2.msra.mxu0 0.0
        %811 = vmatprep.subr.mxu0 0.0
        %812 = vmatpush2.msra.mxu0 0.0
        %813 = vmatprep.subr.mxu0 0.0
        %814 = vmatpush2.msra.mxu0 0.0
        %815 = vmatprep.subr.mxu0 0.0
        %816 = vmatpush2.msra.mxu0 0.0
        %817 = vmatprep.subr.mxu0 0.0
        %818 = vmatpush2.msra.mxu0 0.0
        %819 = vmatprep.subr.mxu0 0.0
        %820 = vmatpush2.msra.mxu0 0.0
        %821 = vmatprep.mubr.f32.mxu0 0.0
        %822 = vmatmul.mubr.f32.gmra.mxu0 %v755
        %v823 = vpop.f32.mrf.mxu0
        %v824 = vadd.f32 0.0, %v823
        %v825 = vpop.f32.mrf.mxu0
        %826 = vdwg.mxu0
        %v827 = vadd.f32 %v748, %v824
        %s828 = scalar_lea.vmem %s5, 16
        %v829 = vld [vmem:[%s828] sm:$0xff]
        %v831 = vsel %vm669, %v829, 0
        %833 = vmatprep.subr.mxu0 0.0
        %834 = vmatpush1.msra.mxu0 0.0
        %835 = vmatprep.subr.mxu0 0.0
        %836 = vmatpush1.msra.mxu0 0.0
        %837 = vmatprep.subr.mxu0 0.0
        %838 = vmatpush1.msra.mxu0 0.0
        %839 = vmatprep.subr.mxu0 0.0
        %840 = vmatpush1.msra.mxu0 0.0
        %841 = vmatprep.subr.mxu0 0.0
        %842 = vmatpush1.msra.mxu0 0.0
        %843 = vmatprep.subr.mxu0 0.0
        %844 = vmatpush1.msra.mxu0 0.0
        %845 = vmatprep.subr.mxu0 0.0
        %846 = vmatpush1.msra.mxu0 0.0
        %847 = vmatprep.subr.mxu0 0.0
        %848 = vmatpush1.msra.mxu0 0.0
        %849 = vmatprep.subr.mxu0 0.0
        %850 = vmatpush1.msra.mxu0 0.0
        %851 = vmatprep.subr.mxu0 0.0
        %852 = vmatpush1.msra.mxu0 0.0
        %853 = vmatprep.subr.mxu0 0.0
        %854 = vmatpush1.msra.mxu0 0.0
        %855 = vmatprep.subr.mxu0 0.0
        %856 = vmatpush1.msra.mxu0 0.0
        %857 = vmatprep.subr.mxu0 0.0
        %858 = vmatpush1.msra.mxu0 0.0
        %859 = vmatprep.subr.mxu0 0.0
        %860 = vmatpush1.msra.mxu0 0.0
        %861 = vmatprep.subr.mxu0 0.0
        %862 = vmatpush1.msra.mxu0 0.0
        %863 = vmatprep.subr.mxu0 0.0
        %864 = vmatpush1.msra.mxu0 %v583
        %865 = vmatprep.subr.mxu0 0.0
        %866 = vmatpush2.msra.mxu0 0.0
        %867 = vmatprep.subr.mxu0 0.0
        %868 = vmatpush2.msra.mxu0 0.0
        %869 = vmatprep.subr.mxu0 0.0
        %870 = vmatpush2.msra.mxu0 0.0
        %871 = vmatprep.subr.mxu0 0.0
        %872 = vmatpush2.msra.mxu0 0.0
        %873 = vmatprep.subr.mxu0 0.0
        %874 = vmatpush2.msra.mxu0 0.0
        %875 = vmatprep.subr.mxu0 0.0
        %876 = vmatpush2.msra.mxu0 0.0
        %877 = vmatprep.subr.mxu0 0.0
        %878 = vmatpush2.msra.mxu0 0.0
        %879 = vmatprep.subr.mxu0 0.0
        %880 = vmatpush2.msra.mxu0 0.0
        %881 = vmatprep.subr.mxu0 0.0
        %882 = vmatpush2.msra.mxu0 0.0
        %883 = vmatprep.subr.mxu0 0.0
        %884 = vmatpush2.msra.mxu0 0.0
        %885 = vmatprep.subr.mxu0 0.0
        %886 = vmatpush2.msra.mxu0 0.0
        %887 = vmatprep.subr.mxu0 0.0
        %888 = vmatpush2.msra.mxu0 0.0
        %889 = vmatprep.subr.mxu0 0.0
        %890 = vmatpush2.msra.mxu0 0.0
        %891 = vmatprep.subr.mxu0 0.0
        %892 = vmatpush2.msra.mxu0 0.0
        %893 = vmatprep.subr.mxu0 0.0
        %894 = vmatpush2.msra.mxu0 0.0
        %895 = vmatprep.subr.mxu0 0.0
        %896 = vmatpush2.msra.mxu0 0.0
        %897 = vmatprep.mubr.f32.mxu0 0.0
        %898 = vmatmul.mubr.f32.gmra.mxu0 %v831
        %v899 = vpop.f32.mrf.mxu0
        %v900 = vadd.f32 0.0, %v899
        %v901 = vpop.f32.mrf.mxu0
        %902 = vdwg.mxu0
        %v903 = vadd.f32 %v827, %v900
        %v904 = vmax.f32 %v903, 0.0
        %v905 = vadd.f32 %v904, %v661
        %v906 = vmax.f32 %v905, 0.0
        %907 = vst [vmem:[%s300] sm:$0xff] %v906
        %908 = vst [vmem:[%s307] sm:$0xff] %v904
        %s909 = sand.u32 %s186, 1
        %s910 = scalar_lea.sflag [#allocation3], %s909
        %s911 = sand.u32 %s186, 1
        %s912 = smul.addr %s911, 8
        %s913 = scalar_lea.vmem [#allocation2], %s912
        %s914 = sand.u32 %s212, 1
        %s915 = scalar_lea.sflag [#allocation5], %s914
        %s916 = sand.u32 %s212, 1
        %s917 = smul.addr %s916, 8
        %s918 = scalar_lea.vmem [#allocation4], %s917
        // Predicated region
        $region49: #{tpu_custom_call.1} parent=47 // pred_check
          %p919 = pneg %p196
        $region50: #{tpu_custom_call.1} parent=47 // pred_check_branch
          %921 = sbr.rel (%p919) target = $region52
        $region51: #{tpu_custom_call.1} parent=47 // pred_region
          %s923 = ssub.s32 128, 128
          %924 = vsyncadd %s910, %s923
          %s925 = smul.addr %s26, 128
          %s926 = scalar_lea.hbm %s7, %s925
          %s928 = sshll.u32 %s913, 4
          %s929 = int_to_ptr.vmem [resolvable:$true] %s928
          %931 = dma.vmem_to_hbm [thread:$0]  %s929, 128, %s926, %s910
        $region52: #{tpu_custom_call.1} parent=47 // pred_fallthru
          _
        // Predicated region
        $region53: #{tpu_custom_call.1} parent=47 // pred_check
          %p932 = pneg %p222
        $region54: #{tpu_custom_call.1} parent=47 // pred_check_branch
          %934 = sbr.rel (%p932) target = $region56
        $region55: #{tpu_custom_call.1} parent=47 // pred_region
          %s936 = ssub.s32 128, 128
          %937 = vsyncadd %s915, %s936
          %s938 = smul.addr %s26, 128
          %s939 = scalar_lea.hbm %s8, %s938
          %s941 = sshll.u32 %s918, 4
          %s942 = int_to_ptr.vmem [resolvable:$true] %s941
          %944 = dma.vmem_to_hbm [thread:$0]  %s942, 128, %s939, %s915
        $region56: #{tpu_custom_call.1} parent=47 // pred_fallthru
          _
      $region48: #{tpu_custom_call.1} parent=5 // pred_fallthru
        _
      %p945 = scmp.le.s32.totalorder 2, %s21
      // Predicated region
      $region57: #{tpu_custom_call.1} parent=5 // pred_check
        %p946 = pneg %p945
      $region58: #{tpu_custom_call.1} parent=5 // pred_check_branch
        %948 = sbr.rel (%p946) target = $region60
      $region59: #{tpu_custom_call.1} parent=5 // pred_region
        %s949 = ssub.s32 %s21, 2
        // Predicated region
        $region61: #{tpu_custom_call.1} parent=59 // pred_check
          %p950 = pneg %p202
        $region62: #{tpu_custom_call.1} parent=59 // pred_check_branch
          %952 = sbr.rel (%p950) target = $region64
        $region63: #{tpu_custom_call.1} parent=59 // pred_region
          %s953 = sand.u32 %s187, 1
          %s954 = scalar_lea.sflag [#allocation3], %s953
          %s955 = sand.u32 %s187, 1
          %s956 = smul.addr %s955, 8
          %s957 = scalar_lea.vmem [#allocation2], %s956
          %958 = dma.done %s954, 128
        $region64: #{tpu_custom_call.1} parent=59 // pred_fallthru
          _
        // Predicated region
        $region65: #{tpu_custom_call.1} parent=59 // pred_check
          %p959 = pneg %p228
        $region66: #{tpu_custom_call.1} parent=59 // pred_check_branch
          %961 = sbr.rel (%p959) target = $region68
        $region67: #{tpu_custom_call.1} parent=59 // pred_region
          %s962 = sand.u32 %s213, 1
          %s963 = scalar_lea.sflag [#allocation5], %s962
          %s964 = sand.u32 %s213, 1
          %s965 = smul.addr %s964, 8
          %s966 = scalar_lea.vmem [#allocation4], %s965
          %967 = dma.done %s963, 128
        $region68: #{tpu_custom_call.1} parent=59 // pred_fallthru
          _
      $region60: #{tpu_custom_call.1} parent=5 // pred_fallthru
        _
    $region6: #{tpu_custom_call.1} parent=1 // loop_footer
      %s25 = sadd.s32 1, %s21
    $region7: #{tpu_custom_call.1} parent=1 // loop_footer_branch
      %20 = sbr.rel target = $region3
    $region8: #{tpu_custom_call.1} parent=1 // loop_exit
      _
    %968 = vsyncpa [#allocation3], 1
    %s969 = scalar_lea.sflag [#allocation3], 1
    %970 = vsyncpa %s969, 1
    %971 = vsyncpa [#allocation5], 1
    %s972 = scalar_lea.sflag [#allocation5], 1
    %973 = vsyncpa %s972, 1

</llo_original>
